<compile_context>
chip_gen: v7x
topology: tpu7x:2x2x1
jax: 0.10.0
libtpu: 0.0.40
codegen_flags: <defaults>
</compile_context>

<pallas_src>
import functools

import jax
import jax.numpy as jnp
from jax.experimental import pallas as pl
from jax.experimental.pallas import tpu as pltpu

N_INPUT = 2
N_OUTPUT = 5
N_HIDDEN = 20
N_LAYERS = 4  # input layer + (N_LAYERS - 1) hidden layers, then the output layer


def _round_up(n, m):
    return ((n + m - 1) // m) * m


def _cdiv(a, b):
    return -(-a // b)


def _choose_tiling(B, batch_tile):
    """Pick (tile, padded_batch) such that
       * tile is lane-aligned (128; 256 when feasible, for the 256-wide MXU N),
       * the grid has >= 2 steps whenever the batch spans >= 2 lane groups
         (so v7x's second TensorCore gets work via the parallel batch axis),
       * padding waste is < one alignment unit per grid step."""
    Bp128 = _round_up(B, 128)
    if Bp128 <= 128:
        return 128, 128
    n_steps = max(2, _cdiv(Bp128, batch_tile))
    align = 256 if Bp128 >= 2 * 256 else 128
    tile = _round_up(_cdiv(Bp128, n_steps), align)
    return tile, n_steps * tile


def _make_mlp_kernel(act_dtype):
    def kernel(x_ref, w0_ref, wh_ref, bh_ref, we_ref, be_ref, o_ref):
        # x_ref : (N_INPUT,  T)   feature-major, batch on lanes
        # w0_ref: (N_HIDDEN, N_INPUT)
        # wh_ref: (N_LAYERS-1, N_HIDDEN, N_HIDDEN)
        # bh_ref: (N_LAYERS,   N_HIDDEN, 1)
        # we_ref: (N_OUTPUT, N_HIDDEN)
        # be_ref: (N_OUTPUT, 1)
        # o_ref : (N_OUTPUT, T)
        #
        # jnp.tanh lowers to the EUP transcendental unit on TPU; if a bundle
        # dump ever shows a VALU polynomial expansion instead, reformulate via
        # jnp.exp + pl.reciprocal(approx=True) to push it back onto the EUP.
        def hidden_layer(w, h, b):
            z = jnp.dot(w.astype(act_dtype), h,
                        preferred_element_type=jnp.float32) + b
            return jnp.tanh(z.astype(act_dtype))

        h = x_ref[...].astype(act_dtype)
        h = hidden_layer(w0_ref[...], h, bh_ref[0])
        h = hidden_layer(wh_ref[0], h, bh_ref[1])
        h = hidden_layer(wh_ref[1], h, bh_ref[2])
        h = hidden_layer(wh_ref[2], h, bh_ref[3])
        o_ref[...] = (
            jnp.dot(we_ref[...].astype(act_dtype), h,
                    preferred_element_type=jnp.float32)
            + be_ref[...]
        ).astype(o_ref.dtype)

    return kernel


def ann_part_model_forward_fm(xt, params, *, batch_tile=8192,
                              activation_dtype=jnp.float32):
    """Feature-major entry point (no wrapper transposes).

    xt: (N_INPUT, B) float32.  Returns (N_OUTPUT, B) float32.
    params: (w0, wh, bh, we, be) with
      w0 (N_HIDDEN, N_INPUT), wh (N_LAYERS-1, N_HIDDEN, N_HIDDEN),
      bh (N_LAYERS, N_HIDDEN, 1), we (N_OUTPUT, N_HIDDEN), be (N_OUTPUT, 1).
    """
    w0, wh, bh, we, be = params
    B = xt.shape[1]
    assert batch_tile % 256 == 0, "batch_tile must be a multiple of 256"

    tile, Bp = _choose_tiling(B, batch_tile)
    if Bp != B:
        # Padded columns only ever see tanh(bias) and are sliced away below.
        xt = jnp.pad(xt, ((0, 0), (0, Bp - B)))

    grid = (Bp // tile,)

    in_specs = [
        pl.BlockSpec((N_INPUT, tile), lambda i: (0, i)),                        # x^T tile
        pl.BlockSpec((N_HIDDEN, N_INPUT), lambda i: (0, 0)),                    # w0
        pl.BlockSpec((N_LAYERS - 1, N_HIDDEN, N_HIDDEN), lambda i: (0, 0, 0)),  # wh
        pl.BlockSpec((N_LAYERS, N_HIDDEN, 1), lambda i: (0, 0, 0)),             # bh
        pl.BlockSpec((N_OUTPUT, N_HIDDEN), lambda i: (0, 0)),                   # we
        pl.BlockSpec((N_OUTPUT, 1), lambda i: (0, 0)),                          # be
    ]
    out_specs = pl.BlockSpec((N_OUTPUT, tile), lambda i: (0, i))

    # The kernel is EUP(tanh)-bound, not MXU-bound; tell XLA the real cost.
    flops = 2 * Bp * (N_INPUT * N_HIDDEN
                      + (N_LAYERS - 1) * N_HIDDEN * N_HIDDEN
                      + N_HIDDEN * N_OUTPUT)
    transcendentals = N_LAYERS * N_HIDDEN * Bp
    param_bytes = 4 * (w0.size + wh.size + bh.size + we.size + be.size)
    bytes_accessed = 4 * Bp * (N_INPUT + N_OUTPUT) + param_bytes
    cost = pl.CostEstimate(flops=flops,
                           transcendentals=transcendentals,
                           bytes_accessed=bytes_accessed)

    out_t = pl.pallas_call(
        _make_mlp_kernel(activation_dtype),
        out_shape=jax.ShapeDtypeStruct((N_OUTPUT, Bp), jnp.float32),
        grid_spec=pltpu.PrefetchScalarGridSpec(
            num_scalar_prefetch=0,
            grid=grid,
            in_specs=in_specs,
            out_specs=out_specs,
        ),
        compiler_params=pltpu.CompilerParams(
            # Batch axis is embarrassingly parallel; shards across TCs on v7x.
            dimension_semantics=(pltpu.PARALLEL,),
        ),
        cost_estimate=cost,
    )(xt, w0, wh, bh, we, be)

    return out_t[:, :B]


def ann_part_model_forward(x, params, *, batch_tile=8192,
                           activation_dtype=jnp.float32):
    """Batch-major wrapper matching the PyTorch module: x (B, N_INPUT) ->
    (B, N_OUTPUT).  The transposes here are pure layout plumbing; call this
    under jit so XLA fuses pad+transpose, or use the _fm entry point if the
    caller can produce/consume feature-major tensors directly."""
    out_fm = ann_part_model_forward_fm(
        x.T, params, batch_tile=batch_tile, activation_dtype=activation_dtype)
    return out_fm.T


def init_params(key):
    """Xavier-normal weights (PyTorch (out, in) layout), zero biases."""
    dims = [N_INPUT] + [N_HIDDEN] * N_LAYERS + [N_OUTPUT]
    ws, bs = [], []
    for i in range(len(dims) - 1):
        fan_in, fan_out = dims[i], dims[i + 1]
        key, sub = jax.random.split(key)
        std = (2.0 / (fan_in + fan_out)) ** 0.5
        ws.append(std * jax.random.normal(sub, (fan_out, fan_in), dtype=jnp.float32))
        bs.append(jnp.zeros((fan_out, 1), dtype=jnp.float32))
    w0 = ws[0]                                   # (20, 2)
    wh = jnp.stack(ws[1:N_LAYERS], axis=0)       # (3, 20, 20)
    bh = jnp.stack(bs[0:N_LAYERS], axis=0)       # (4, 20, 1)
    we = ws[-1]                                  # (5, 20)
    be = bs[-1]                                  # (5, 1)
    return w0, wh, bh, we, be


def reference_forward(x, params):
    w0, wh, bh, we, be = params
    h = jnp.tanh(x @ w0.T + bh[0].T)
    for l in range(N_LAYERS - 1):
        h = jnp.tanh(h @ wh[l].T + bh[l + 1].T)
    return h @ we.T + be.T


if __name__ == "__main__":
    key = jax.random.PRNGKey(0)
    key, xkey = jax.random.split(key)
    params = init_params(key)

    fwd = jax.jit(functools.partial(ann_part_model_forward, batch_tile=8192))

    # f32 path: exact check vs reference at a small batch (single 128-lane
    # tile) and at a batch that exercises the >=2-step adaptive tiling.
    for B in (64, 300):
        xB = jax.random.normal(jax.random.fold_in(xkey, B), (B, N_INPUT),
                               dtype=jnp.float32)
        out = jax.block_until_ready(fwd(xB, params))
        ref = reference_forward(xB, params)
        assert out.shape == (B, N_OUTPUT)
        assert jnp.allclose(out, ref, atol=1e-5, rtol=1e-5), \
            f"mismatch vs reference at B={B}"

    # Optional bf16-activation path (v6e/v7x lever; keep f32 on v5e).
    x64 = jax.random.normal(jax.random.fold_in(xkey, 64), (64, N_INPUT),
                            dtype=jnp.float32)
    out_bf16 = jax.block_until_ready(
        ann_part_model_forward(x64, params, activation_dtype=jnp.bfloat16))
    ref64 = reference_forward(x64, params)
    assert out_bf16.shape == (64, N_OUTPUT)
    assert bool(jnp.all(jnp.isfinite(out_bf16)))
    assert jnp.allclose(out_bf16, ref64, atol=5e-2), "bf16 path diverged"

    print("KERNEL_OK")
</pallas_src>

<mosaic_0001>
module attributes {stable_mosaic.version = 11 : i64} {
  func.func @kernel(%arg0: i32, %arg1: memref<2x128xf32, #tpu.memory_space<vmem>>, %arg2: memref<20x2xf32, #tpu.memory_space<vmem>>, %arg3: memref<3x20x20xf32, #tpu.memory_space<vmem>>, %arg4: memref<4x20x1xf32, #tpu.memory_space<vmem>>, %arg5: memref<5x20xf32, #tpu.memory_space<vmem>>, %arg6: memref<5x1xf32, #tpu.memory_space<vmem>>, %arg7: memref<5x128xf32, #tpu.memory_space<vmem>>) attributes {dimension_semantics = [#tpu.dimension_semantics<parallel>], iteration_bounds = array<i64: 1>, scalar_prefetch = 0 : i64, scratch_operands = 0 : i64, tpu.core_type = #tpu.core_type<tc>, window_params = [{transform_indices = @transform_0, window_bounds = array<i64: 2, 128>}, {pipeline_mode = #tpu.pipeline_mode<synchronous>, transform_indices = @transform_1, window_bounds = array<i64: 20, 2>}, {pipeline_mode = #tpu.pipeline_mode<synchronous>, transform_indices = @transform_2, window_bounds = array<i64: 3, 20, 20>}, {pipeline_mode = #tpu.pipeline_mode<synchronous>, transform_indices = @transform_3, window_bounds = array<i64: 4, 20, 1>}, {pipeline_mode = #tpu.pipeline_mode<synchronous>, transform_indices = @transform_4, window_bounds = array<i64: 5, 20>}, {pipeline_mode = #tpu.pipeline_mode<synchronous>, transform_indices = @transform_5, window_bounds = array<i64: 5, 1>}, {transform_indices = @transform_6, window_bounds = array<i64: 5, 128>}]} {
    %c0 = arith.constant 0 : index
    %c0_0 = arith.constant 0 : index
    %0 = vector.load %arg1[%c0, %c0_0] : memref<2x128xf32, #tpu.memory_space<vmem>>, vector<2x128xf32>
    %c0_1 = arith.constant 0 : index
    %c0_2 = arith.constant 0 : index
    %1 = vector.load %arg2[%c0_1, %c0_2] : memref<20x2xf32, #tpu.memory_space<vmem>>, vector<20x2xf32>
    %c0_3 = arith.constant 0 : index
    %c0_4 = arith.constant 0 : index
    %c0_5 = arith.constant 0 : index
    %2 = vector.load %arg4[%c0_3, %c0_4, %c0_5] : memref<4x20x1xf32, #tpu.memory_space<vmem>>, vector<1x20x1xf32>
    %3 = vector.shape_cast %2 : vector<1x20x1xf32> to vector<20x1xf32>
    %cst = arith.constant dense<0.000000e+00> : vector<20x128xf32>
    %4 = tpu.matmul %1, %0, %cst {dimension_numbers = #tpu.dot_dimension_numbers<[1], [0], [0], [1], [0, 0, 1, 1], [], []>} : vector<20x2xf32>, vector<2x128xf32>, vector<20x128xf32> -> vector<20x128xf32>
    %5 = vector.broadcast %3 : vector<20x1xf32> to vector<20x128xf32>
    %6 = arith.addf %4, %5 : vector<20x128xf32>
    %7 = math.tanh %6 : vector<20x128xf32>
    %c0_6 = arith.constant 0 : index
    %c0_7 = arith.constant 0 : index
    %c0_8 = arith.constant 0 : index
    %8 = vector.load %arg3[%c0_6, %c0_7, %c0_8] : memref<3x20x20xf32, #tpu.memory_space<vmem>>, vector<1x20x20xf32>
    %9 = vector.shape_cast %8 : vector<1x20x20xf32> to vector<20x20xf32>
    %c1 = arith.constant 1 : index
    %c0_9 = arith.constant 0 : index
    %c0_10 = arith.constant 0 : index
    %10 = vector.load %arg4[%c1, %c0_9, %c0_10] : memref<4x20x1xf32, #tpu.memory_space<vmem>>, vector<1x20x1xf32>
    %11 = vector.shape_cast %10 : vector<1x20x1xf32> to vector<20x1xf32>
    %cst_11 = arith.constant dense<0.000000e+00> : vector<20x128xf32>
    %12 = tpu.matmul %9, %7, %cst_11 {dimension_numbers = #tpu.dot_dimension_numbers<[1], [0], [0], [1], [0, 0, 1, 1], [], []>} : vector<20x20xf32>, vector<20x128xf32>, vector<20x128xf32> -> vector<20x128xf32>
    %13 = vector.broadcast %11 : vector<20x1xf32> to vector<20x128xf32>
    %14 = arith.addf %12, %13 : vector<20x128xf32>
    %15 = math.tanh %14 : vector<20x128xf32>
    %c1_12 = arith.constant 1 : index
    %c0_13 = arith.constant 0 : index
    %c0_14 = arith.constant 0 : index
    %16 = vector.load %arg3[%c1_12, %c0_13, %c0_14] : memref<3x20x20xf32, #tpu.memory_space<vmem>>, vector<1x20x20xf32>
    %17 = vector.shape_cast %16 : vector<1x20x20xf32> to vector<20x20xf32>
    %c2 = arith.constant 2 : index
    %c0_15 = arith.constant 0 : index
    %c0_16 = arith.constant 0 : index
    %18 = vector.load %arg4[%c2, %c0_15, %c0_16] : memref<4x20x1xf32, #tpu.memory_space<vmem>>, vector<1x20x1xf32>
    %19 = vector.shape_cast %18 : vector<1x20x1xf32> to vector<20x1xf32>
    %cst_17 = arith.constant dense<0.000000e+00> : vector<20x128xf32>
    %20 = tpu.matmul %17, %15, %cst_17 {dimension_numbers = #tpu.dot_dimension_numbers<[1], [0], [0], [1], [0, 0, 1, 1], [], []>} : vector<20x20xf32>, vector<20x128xf32>, vector<20x128xf32> -> vector<20x128xf32>
    %21 = vector.broadcast %19 : vector<20x1xf32> to vector<20x128xf32>
    %22 = arith.addf %20, %21 : vector<20x128xf32>
    %23 = math.tanh %22 : vector<20x128xf32>
    %c2_18 = arith.constant 2 : index
    %c0_19 = arith.constant 0 : index
    %c0_20 = arith.constant 0 : index
    %24 = vector.load %arg3[%c2_18, %c0_19, %c0_20] : memref<3x20x20xf32, #tpu.memory_space<vmem>>, vector<1x20x20xf32>
    %25 = vector.shape_cast %24 : vector<1x20x20xf32> to vector<20x20xf32>
    %c3 = arith.constant 3 : index
    %c0_21 = arith.constant 0 : index
    %c0_22 = arith.constant 0 : index
    %26 = vector.load %arg4[%c3, %c0_21, %c0_22] : memref<4x20x1xf32, #tpu.memory_space<vmem>>, vector<1x20x1xf32>
    %27 = vector.shape_cast %26 : vector<1x20x1xf32> to vector<20x1xf32>
    %cst_23 = arith.constant dense<0.000000e+00> : vector<20x128xf32>
    %28 = tpu.matmul %25, %23, %cst_23 {dimension_numbers = #tpu.dot_dimension_numbers<[1], [0], [0], [1], [0, 0, 1, 1], [], []>} : vector<20x20xf32>, vector<20x128xf32>, vector<20x128xf32> -> vector<20x128xf32>
    %29 = vector.broadcast %27 : vector<20x1xf32> to vector<20x128xf32>
    %30 = arith.addf %28, %29 : vector<20x128xf32>
    %31 = math.tanh %30 : vector<20x128xf32>
    %c0_24 = arith.constant 0 : index
    %c0_25 = arith.constant 0 : index
    %32 = vector.load %arg5[%c0_24, %c0_25] : memref<5x20xf32, #tpu.memory_space<vmem>>, vector<5x20xf32>
    %cst_26 = arith.constant dense<0.000000e+00> : vector<5x128xf32>
    %33 = tpu.matmul %32, %31, %cst_26 {dimension_numbers = #tpu.dot_dimension_numbers<[1], [0], [0], [1], [0, 0, 1, 1], [], []>} : vector<5x20xf32>, vector<20x128xf32>, vector<5x128xf32> -> vector<5x128xf32>
    %c0_27 = arith.constant 0 : index
    %c0_28 = arith.constant 0 : index
    %34 = vector.load %arg6[%c0_27, %c0_28] : memref<5x1xf32, #tpu.memory_space<vmem>>, vector<5x1xf32>
    %35 = vector.broadcast %34 : vector<5x1xf32> to vector<5x128xf32>
    %36 = arith.addf %33, %35 : vector<5x128xf32>
    %c0_29 = arith.constant 0 : index
    %c0_30 = arith.constant 0 : index
    %37 = vector.load %arg7[%c0_29, %c0_30] : memref<5x128xf32, #tpu.memory_space<vmem>>, vector<5x128xf32>
    tpu.vector_store %arg7[%c0_29, %c0_30], %36 {strides = array<i32>} : memref<5x128xf32, #tpu.memory_space<vmem>>, vector<5x128xf32>,
    return
  }
  func.func @transform_0(%arg0: i32) -> (i32, i32) {
    %c0_i32 = arith.constant 0 : i32
    %c0_i32_0 = arith.constant 0 : i32
    return %c0_i32, %arg0 : i32, i32
  }
  func.func @transform_1(%arg0: i32) -> (i32, i32) {
    %c0_i32 = arith.constant 0 : i32
    %c0_i32_0 = arith.constant 0 : i32
    %c0_i32_1 = arith.constant 0 : i32
    return %c0_i32, %c0_i32_0 : i32, i32
  }
  func.func @transform_2(%arg0: i32) -> (i32, i32, i32) {
    %c0_i32 = arith.constant 0 : i32
    %c0_i32_0 = arith.constant 0 : i32
    %c0_i32_1 = arith.constant 0 : i32
    %c0_i32_2 = arith.constant 0 : i32
    return %c0_i32, %c0_i32_0, %c0_i32_1 : i32, i32, i32
  }
  func.func @transform_3(%arg0: i32) -> (i32, i32, i32) {
    %c0_i32 = arith.constant 0 : i32
    %c0_i32_0 = arith.constant 0 : i32
    %c0_i32_1 = arith.constant 0 : i32
    %c0_i32_2 = arith.constant 0 : i32
    return %c0_i32, %c0_i32_0, %c0_i32_1 : i32, i32, i32
  }
  func.func @transform_4(%arg0: i32) -> (i32, i32) {
    %c0_i32 = arith.constant 0 : i32
    %c0_i32_0 = arith.constant 0 : i32
    %c0_i32_1 = arith.constant 0 : i32
    return %c0_i32, %c0_i32_0 : i32, i32
  }
  func.func @transform_5(%arg0: i32) -> (i32, i32) {
    %c0_i32 = arith.constant 0 : i32
    %c0_i32_0 = arith.constant 0 : i32
    %c0_i32_1 = arith.constant 0 : i32
    return %c0_i32, %c0_i32_0 : i32, i32
  }
  func.func @transform_6(%arg0: i32) -> (i32, i32) {
    %c0_i32 = arith.constant 0 : i32
    %c0_i32_0 = arith.constant 0 : i32
    return %c0_i32, %arg0 : i32, i32
  }
}

</mosaic_0001>

<llo_original>
// kernel: ann_part_model_forward.1
$region0: #{ann_part_model_forward.1}
  #allocation0 [shape = 'u32[]', space=smem, size = 0x4, offset = 0x4, fixed_abs, tag = 'smem constant byte address 0x4 - core index']
  #allocation1 [shape = 'u32[144,128]{1,0:T(1,128)}', space=vmem, size = 0x12000, scoped, tag = 'internal scratch']
  %s0 = inlined_call_operand.vmem [shape: f32[2,128], index: 0, kind: input, shape index: {}]
  %s1 = inlined_call_operand.vmem [shape: f32[20,2], index: 1, kind: input, shape index: {}]
  %s2 = inlined_call_operand.vmem [shape: f32[3,20,20], index: 2, kind: input, shape index: {}]
  %s3 = inlined_call_operand.vmem [shape: f32[4,20,1], index: 3, kind: input, shape index: {}]
  %s4 = inlined_call_operand.vmem [shape: f32[5,20], index: 4, kind: input, shape index: {}]
  %s5 = inlined_call_operand.vmem [shape: f32[5,1], index: 5, kind: input, shape index: {}]
  %s6 = inlined_call_operand.vmem [shape: f32[5,128], index: 6, kind: output, shape index: {}]
  %s7 = sld [smem:[#allocation0]]
  $region34: #{ann_part_model_forward.1} parent=0
    _
  %s9 = ssub.s32 1, %s7
  %s10 = scalar_select 0, %s9, %s7
  // Predicated region
  $region2: #{ann_part_model_forward.1} parent=0 // pred_check
    _
  $region3: #{ann_part_model_forward.1} parent=0 // pred_check_branch
    %12 = sbr.rel (0) target = $region5
  $region4: #{ann_part_model_forward.1} parent=0 // pred_region
    _
  $region5: #{ann_part_model_forward.1} parent=0 // pred_fallthru
    _
  // Predicated region
  $region6: #{ann_part_model_forward.1} parent=0 // pred_check
    _
  $region7: #{ann_part_model_forward.1} parent=0 // pred_check_branch
    %14 = sbr.rel (0) target = $region9
  $region8: #{ann_part_model_forward.1} parent=0 // pred_region
    _
  $region9: #{ann_part_model_forward.1} parent=0 // pred_fallthru
    _
  // Predicated region
  $region10: #{ann_part_model_forward.1} parent=0 // pred_check
    _
  $region11: #{ann_part_model_forward.1} parent=0 // pred_check_branch
    %16 = sbr.rel (0) target = $region13
  $region12: #{ann_part_model_forward.1} parent=0 // pred_region
    _
  $region13: #{ann_part_model_forward.1} parent=0 // pred_fallthru
    _
  // Predicated region
  $region14: #{ann_part_model_forward.1} parent=0 // pred_check
    _
  $region15: #{ann_part_model_forward.1} parent=0 // pred_check_branch
    %18 = sbr.rel (0) target = $region17
  $region16: #{ann_part_model_forward.1} parent=0 // pred_region
    _
  $region17: #{ann_part_model_forward.1} parent=0 // pred_fallthru
    _
  // Predicated region
  $region18: #{ann_part_model_forward.1} parent=0 // pred_check
    _
  $region19: #{ann_part_model_forward.1} parent=0 // pred_check_branch
    %20 = sbr.rel (0) target = $region21
  $region20: #{ann_part_model_forward.1} parent=0 // pred_region
    _
  $region21: #{ann_part_model_forward.1} parent=0 // pred_fallthru
    _
  // Predicated region
  $region22: #{ann_part_model_forward.1} parent=0 // pred_check
    _
  $region23: #{ann_part_model_forward.1} parent=0 // pred_check_branch
    %22 = sbr.rel (0) target = $region25
  $region24: #{ann_part_model_forward.1} parent=0 // pred_region
    _
  $region25: #{ann_part_model_forward.1} parent=0 // pred_fallthru
    _
  %v23 = vld [vmem:[%s0] sm:$0x3]
  %v24 = vld [vmem:[%s1] sm:$0xff]
  %v25 = vld [vmem:[%s1 + $0x8] sm:$0xff]
  %v26 = vld [vmem:[%s1 + $0x10] sm:$0xf]
  %v27 = vld [vmem:[%s3] sm:$0xff]
  %v28 = vld [vmem:[%s3 + $0x8] sm:$0xff]
  %v29 = vld [vmem:[%s3 + $0x10] sm:$0xf]
  %31 = vset.pattern.permute.xlu0 0
  %32 = vperm.xlu0 %31, %v27
  %v33 = vpop.permute.xlu0 %32
  %36 = vset.pattern.permute.xlu0 0
  %37 = vperm.xlu0 %36, %v28
  %v38 = vpop.permute.xlu0 %37
  %41 = vset.pattern.permute.xlu0 0
  %42 = vperm.xlu0 %41, %v29
  %v43 = vpop.permute.xlu0 %42
  %vm45 = vcmask 15360
  %v47 = vsel %vm45, %v24, 0
  %v50 = vsel %vm45, %v25, 0
  %v53 = vsel %vm45, %v26, 0
  %vm55 = vcmask 1041408
  %v57 = vsel %vm55, %v23, 0
  %59 = vmatprep.subr.mxu0 0.0
  %60 = vmatpush1.msra.mxu0 %v57
  %61 = vmatprep.subr.mxu0 0.0
  %62 = vmatpush1.msra.mxu0 0.0
  %63 = vmatprep.subr.mxu0 0.0
  %64 = vmatpush1.msra.mxu0 0.0
  %65 = vmatprep.subr.mxu0 0.0
  %66 = vmatpush1.msra.mxu0 0.0
  %67 = vmatprep.subr.mxu0 0.0
  %68 = vmatpush1.msra.mxu0 0.0
  %69 = vmatprep.subr.mxu0 0.0
  %70 = vmatpush1.msra.mxu0 0.0
  %71 = vmatprep.subr.mxu0 0.0
  %72 = vmatpush1.msra.mxu0 0.0
  %73 = vmatprep.subr.mxu0 0.0
  %74 = vmatpush1.msra.mxu0 0.0
  %75 = vmatprep.subr.mxu0 0.0
  %76 = vmatpush1.msra.mxu0 0.0
  %77 = vmatprep.subr.mxu0 0.0
  %78 = vmatpush1.msra.mxu0 0.0
  %79 = vmatprep.subr.mxu0 0.0
  %80 = vmatpush1.msra.mxu0 0.0
  %81 = vmatprep.subr.mxu0 0.0
  %82 = vmatpush1.msra.mxu0 0.0
  %83 = vmatprep.subr.mxu0 0.0
  %84 = vmatpush1.msra.mxu0 0.0
  %85 = vmatprep.subr.mxu0 0.0
  %86 = vmatpush1.msra.mxu0 0.0
  %87 = vmatprep.subr.mxu0 0.0
  %88 = vmatpush1.msra.mxu0 0.0
  %89 = vmatprep.subr.mxu0 0.0
  %90 = vmatpush1.msra.mxu0 0.0
  %91 = vmatprep.subr.mxu0 0.0
  %92 = vmatpush1.msra.mxu0 0.0
  %93 = vmatprep.subr.mxu0 0.0
  %94 = vmatpush1.msra.mxu0 0.0
  %95 = vmatprep.subr.mxu0 0.0
  %96 = vmatpush1.msra.mxu0 0.0
  %97 = vmatprep.subr.mxu0 0.0
  %98 = vmatpush1.msra.mxu0 0.0
  %99 = vmatprep.subr.mxu0 0.0
  %100 = vmatpush1.msra.mxu0 0.0
  %101 = vmatprep.subr.mxu0 0.0
  %102 = vmatpush1.msra.mxu0 0.0
  %103 = vmatprep.subr.mxu0 0.0
  %104 = vmatpush1.msra.mxu0 0.0
  %105 = vmatprep.subr.mxu0 0.0
  %106 = vmatpush1.msra.mxu0 0.0
  %107 = vmatprep.subr.mxu0 0.0
  %108 = vmatpush1.msra.mxu0 0.0
  %109 = vmatprep.subr.mxu0 0.0
  %110 = vmatpush1.msra.mxu0 0.0
  %111 = vmatprep.subr.mxu0 0.0
  %112 = vmatpush1.msra.mxu0 0.0
  %113 = vmatprep.subr.mxu0 0.0
  %114 = vmatpush1.msra.mxu0 0.0
  %115 = vmatprep.subr.mxu0 0.0
  %116 = vmatpush1.msra.mxu0 0.0
  %117 = vmatprep.subr.mxu0 0.0
  %118 = vmatpush1.msra.mxu0 0.0
  %119 = vmatprep.subr.mxu0 0.0
  %120 = vmatpush1.msra.mxu0 0.0
  %121 = vmatprep.subr.mxu0 0.0
  %122 = vmatpush1.msra.mxu0 0.0
  %123 = vmatprep.mubr.f32.mxu0 0.0
  %124 = vmatmul.mubr.f32.gmra.mrb[0].mxu0 %v47
  %v125 = vpop.f32.mrb[0].mxu0
  %v126 = vadd.f32 %v33, %v125
  %v127 = vpop.f32.mrb[0].mxu0
  %128 = vmatprep.mubr.f32.mxu0 0.0
  %129 = vmatmul.mubr.f32.gmra.mrb[0].mxu0 %v50
  %v130 = vpop.f32.mrb[0].mxu0
  %v131 = vadd.f32 %v38, %v130
  %v132 = vpop.f32.mrb[0].mxu0
  %133 = vmatprep.mubr.f32.mxu0 0.0
  %134 = vmatmul.mubr.f32.gmra.mrb[0].mxu0 %v53
  %v135 = vpop.f32.mrb[0].mxu0
  %v136 = vadd.f32 %v43, %v135
  %v137 = vpop.f32.mrb[0].mxu0
  %138 = vdwg.mxu0
  %v139 = vtanh.pop %v126
  %v140 = vtanh.pop %v131
  %v141 = vtanh.pop %v136
  %v142 = vld [vmem:[%s2] sm:$0xff]
  %v143 = vld [vmem:[%s2 + $0x8] sm:$0xff]
  %v144 = vld [vmem:[%s2 + $0x10] sm:$0xf]
  %s145 = scalar_lea.vmem %s3, 24
  %v146 = vld [vmem:[%s145] sm:$0xff]
  %v147 = vld [vmem:[%s145 + $0x8] sm:$0xff]
  %v148 = vld [vmem:[%s145 + $0x10] sm:$0xf]
  %150 = vset.pattern.permute.xlu0 0
  %151 = vperm.xlu0 %150, %v146
  %v152 = vpop.permute.xlu0 %151
  %155 = vset.pattern.permute.xlu0 0
  %156 = vperm.xlu0 %155, %v147
  %v157 = vpop.permute.xlu0 %156
  %160 = vset.pattern.permute.xlu0 0
  %161 = vperm.xlu0 %160, %v148
  %v162 = vpop.permute.xlu0 %161
  %vm164 = vcmask 162816
  %v166 = vsel %vm164, %v142, 0
  %v169 = vsel %vm164, %v143, 0
  %v172 = vsel %vm164, %v144, 0
  %vm174 = vcmask 1043456
  %v176 = vsel %vm174, %v141, 0
  %178 = vmatprep.subr.mxu0 0.0
  %179 = vmatpush1.msra.mxu0 %v139
  %180 = vmatprep.subr.mxu0 0.0
  %181 = vmatpush1.msra.mxu0 %v140
  %182 = vmatprep.subr.mxu0 0.0
  %183 = vmatpush1.msra.mxu0 %v176
  %184 = vmatprep.subr.mxu0 0.0
  %185 = vmatpush1.msra.mxu0 0.0
  %186 = vmatprep.subr.mxu0 0.0
  %187 = vmatpush1.msra.mxu0 0.0
  %188 = vmatprep.subr.mxu0 0.0
  %189 = vmatpush1.msra.mxu0 0.0
  %190 = vmatprep.subr.mxu0 0.0
  %191 = vmatpush1.msra.mxu0 0.0
  %192 = vmatprep.subr.mxu0 0.0
  %193 = vmatpush1.msra.mxu0 0.0
  %194 = vmatprep.subr.mxu0 0.0
  %195 = vmatpush1.msra.mxu0 0.0
  %196 = vmatprep.subr.mxu0 0.0
  %197 = vmatpush1.msra.mxu0 0.0
  %198 = vmatprep.subr.mxu0 0.0
  %199 = vmatpush1.msra.mxu0 0.0
  %200 = vmatprep.subr.mxu0 0.0
  %201 = vmatpush1.msra.mxu0 0.0
  %202 = vmatprep.subr.mxu0 0.0
  %203 = vmatpush1.msra.mxu0 0.0
  %204 = vmatprep.subr.mxu0 0.0
  %205 = vmatpush1.msra.mxu0 0.0
  %206 = vmatprep.subr.mxu0 0.0
  %207 = vmatpush1.msra.mxu0 0.0
  %208 = vmatprep.subr.mxu0 0.0
  %209 = vmatpush1.msra.mxu0 0.0
  %210 = vmatprep.subr.mxu0 0.0
  %211 = vmatpush1.msra.mxu0 0.0
  %212 = vmatprep.subr.mxu0 0.0
  %213 = vmatpush1.msra.mxu0 0.0
  %214 = vmatprep.subr.mxu0 0.0
  %215 = vmatpush1.msra.mxu0 0.0
  %216 = vmatprep.subr.mxu0 0.0
  %217 = vmatpush1.msra.mxu0 0.0
  %218 = vmatprep.subr.mxu0 0.0
  %219 = vmatpush1.msra.mxu0 0.0
  %220 = vmatprep.subr.mxu0 0.0
  %221 = vmatpush1.msra.mxu0 0.0
  %222 = vmatprep.subr.mxu0 0.0
  %223 = vmatpush1.msra.mxu0 0.0
  %224 = vmatprep.subr.mxu0 0.0
  %225 = vmatpush1.msra.mxu0 0.0
  %226 = vmatprep.subr.mxu0 0.0
  %227 = vmatpush1.msra.mxu0 0.0
  %228 = vmatprep.subr.mxu0 0.0
  %229 = vmatpush1.msra.mxu0 0.0
  %230 = vmatprep.subr.mxu0 0.0
  %231 = vmatpush1.msra.mxu0 0.0
  %232 = vmatprep.subr.mxu0 0.0
  %233 = vmatpush1.msra.mxu0 0.0
  %234 = vmatprep.subr.mxu0 0.0
  %235 = vmatpush1.msra.mxu0 0.0
  %236 = vmatprep.subr.mxu0 0.0
  %237 = vmatpush1.msra.mxu0 0.0
  %238 = vmatprep.subr.mxu0 0.0
  %239 = vmatpush1.msra.mxu0 0.0
  %240 = vmatprep.subr.mxu0 0.0
  %241 = vmatpush1.msra.mxu0 0.0
  %242 = vmatprep.mubr.f32.mxu0 0.0
  %243 = vmatmul.mubr.f32.gmra.mrb[0].mxu0 %v166
  %v244 = vpop.f32.mrb[0].mxu0
  %v245 = vadd.f32 %v152, %v244
  %v246 = vpop.f32.mrb[0].mxu0
  %247 = vmatprep.mubr.f32.mxu0 0.0
  %248 = vmatmul.mubr.f32.gmra.mrb[0].mxu0 %v169
  %v249 = vpop.f32.mrb[0].mxu0
  %v250 = vadd.f32 %v157, %v249
  %v251 = vpop.f32.mrb[0].mxu0
  %252 = vmatprep.mubr.f32.mxu0 0.0
  %253 = vmatmul.mubr.f32.gmra.mrb[0].mxu0 %v172
  %v254 = vpop.f32.mrb[0].mxu0
  %v255 = vadd.f32 %v162, %v254
  %v256 = vpop.f32.mrb[0].mxu0
  %257 = vdwg.mxu0
  %v258 = vtanh.pop %v245
  %v259 = vtanh.pop %v250
  %v260 = vtanh.pop %v255
  %s261 = scalar_lea.vmem %s2, 24
  %v262 = vld [vmem:[%s261] sm:$0xff]
  %v263 = vld [vmem:[%s261 + $0x8] sm:$0xff]
  %v264 = vld [vmem:[%s261 + $0x10] sm:$0xf]
  %s265 = scalar_lea.vmem %s3, 48
  %v266 = vld [vmem:[%s265] sm:$0xff]
  %v267 = vld [vmem:[%s265 + $0x8] sm:$0xff]
  %v268 = vld [vmem:[%s265 + $0x10] sm:$0xf]
  %270 = vset.pattern.permute.xlu0 0
  %271 = vperm.xlu0 %270, %v266
  %v272 = vpop.permute.xlu0 %271
  %275 = vset.pattern.permute.xlu0 0
  %276 = vperm.xlu0 %275, %v267
  %v277 = vpop.permute.xlu0 %276
  %280 = vset.pattern.permute.xlu0 0
  %281 = vperm.xlu0 %280, %v268
  %v282 = vpop.permute.xlu0 %281
  %v285 = vsel %vm164, %v262, 0
  %v288 = vsel %vm164, %v263, 0
  %v291 = vsel %vm164, %v264, 0
  %v294 = vsel %vm174, %v260, 0
  %296 = vmatprep.subr.mxu0 0.0
  %297 = vmatpush1.msra.mxu0 %v258
  %298 = vmatprep.subr.mxu0 0.0
  %299 = vmatpush1.msra.mxu0 %v259
  %300 = vmatprep.subr.mxu0 0.0
  %301 = vmatpush1.msra.mxu0 %v294
  %302 = vmatprep.subr.mxu0 0.0
  %303 = vmatpush1.msra.mxu0 0.0
  %304 = vmatprep.subr.mxu0 0.0
  %305 = vmatpush1.msra.mxu0 0.0
  %306 = vmatprep.subr.mxu0 0.0
  %307 = vmatpush1.msra.mxu0 0.0
  %308 = vmatprep.subr.mxu0 0.0
  %309 = vmatpush1.msra.mxu0 0.0
  %310 = vmatprep.subr.mxu0 0.0
  %311 = vmatpush1.msra.mxu0 0.0
  %312 = vmatprep.subr.mxu0 0.0
  %313 = vmatpush1.msra.mxu0 0.0
  %314 = vmatprep.subr.mxu0 0.0
  %315 = vmatpush1.msra.mxu0 0.0
  %316 = vmatprep.subr.mxu0 0.0
  %317 = vmatpush1.msra.mxu0 0.0
  %318 = vmatprep.subr.mxu0 0.0
  %319 = vmatpush1.msra.mxu0 0.0
  %320 = vmatprep.subr.mxu0 0.0
  %321 = vmatpush1.msra.mxu0 0.0
  %322 = vmatprep.subr.mxu0 0.0
  %323 = vmatpush1.msra.mxu0 0.0
  %324 = vmatprep.subr.mxu0 0.0
  %325 = vmatpush1.msra.mxu0 0.0
  %326 = vmatprep.subr.mxu0 0.0
  %327 = vmatpush1.msra.mxu0 0.0
  %328 = vmatprep.subr.mxu0 0.0
  %329 = vmatpush1.msra.mxu0 0.0
  %330 = vmatprep.subr.mxu0 0.0
  %331 = vmatpush1.msra.mxu0 0.0
  %332 = vmatprep.subr.mxu0 0.0
  %333 = vmatpush1.msra.mxu0 0.0
  %334 = vmatprep.subr.mxu0 0.0
  %335 = vmatpush1.msra.mxu0 0.0
  %336 = vmatprep.subr.mxu0 0.0
  %337 = vmatpush1.msra.mxu0 0.0
  %338 = vmatprep.subr.mxu0 0.0
  %339 = vmatpush1.msra.mxu0 0.0
  %340 = vmatprep.subr.mxu0 0.0
  %341 = vmatpush1.msra.mxu0 0.0
  %342 = vmatprep.subr.mxu0 0.0
  %343 = vmatpush1.msra.mxu0 0.0
  %344 = vmatprep.subr.mxu0 0.0
  %345 = vmatpush1.msra.mxu0 0.0
  %346 = vmatprep.subr.mxu0 0.0
  %347 = vmatpush1.msra.mxu0 0.0
  %348 = vmatprep.subr.mxu0 0.0
  %349 = vmatpush1.msra.mxu0 0.0
  %350 = vmatprep.subr.mxu0 0.0
  %351 = vmatpush1.msra.mxu0 0.0
  %352 = vmatprep.subr.mxu0 0.0
  %353 = vmatpush1.msra.mxu0 0.0
  %354 = vmatprep.subr.mxu0 0.0
  %355 = vmatpush1.msra.mxu0 0.0
  %356 = vmatprep.subr.mxu0 0.0
  %357 = vmatpush1.msra.mxu0 0.0
  %358 = vmatprep.subr.mxu0 0.0
  %359 = vmatpush1.msra.mxu0 0.0
  %360 = vmatprep.mubr.f32.mxu0 0.0
  %361 = vmatmul.mubr.f32.gmra.mrb[0].mxu0 %v285
  %v362 = vpop.f32.mrb[0].mxu0
  %v363 = vadd.f32 %v272, %v362
  %v364 = vpop.f32.mrb[0].mxu0
  %365 = vmatprep.mubr.f32.mxu0 0.0
  %366 = vmatmul.mubr.f32.gmra.mrb[0].mxu0 %v288
  %v367 = vpop.f32.mrb[0].mxu0
  %v368 = vadd.f32 %v277, %v367
  %v369 = vpop.f32.mrb[0].mxu0
  %370 = vmatprep.mubr.f32.mxu0 0.0
  %371 = vmatmul.mubr.f32.gmra.mrb[0].mxu0 %v291
  %v372 = vpop.f32.mrb[0].mxu0
  %v373 = vadd.f32 %v282, %v372
  %v374 = vpop.f32.mrb[0].mxu0
  %375 = vdwg.mxu0
  %v376 = vtanh.pop %v363
  %v377 = vtanh.pop %v368
  %v378 = vtanh.pop %v373
  %s379 = scalar_lea.vmem %s2, 48
  %v380 = vld [vmem:[%s379] sm:$0xff]
  %v381 = vld [vmem:[%s379 + $0x8] sm:$0xff]
  %v382 = vld [vmem:[%s379 + $0x10] sm:$0xf]
  %s383 = scalar_lea.vmem %s3, 72
  %v384 = vld [vmem:[%s383] sm:$0xff]
  %v385 = vld [vmem:[%s383 + $0x8] sm:$0xff]
  %v386 = vld [vmem:[%s383 + $0x10] sm:$0xf]
  %388 = vset.pattern.permute.xlu0 0
  %389 = vperm.xlu0 %388, %v384
  %v390 = vpop.permute.xlu0 %389
  %393 = vset.pattern.permute.xlu0 0
  %394 = vperm.xlu0 %393, %v385
  %v395 = vpop.permute.xlu0 %394
  %398 = vset.pattern.permute.xlu0 0
  %399 = vperm.xlu0 %398, %v386
  %v400 = vpop.permute.xlu0 %399
  %v403 = vsel %vm164, %v380, 0
  %v406 = vsel %vm164, %v381, 0
  %v409 = vsel %vm164, %v382, 0
  %v412 = vsel %vm174, %v378, 0
  %414 = vmatprep.subr.mxu0 0.0
  %415 = vmatpush1.msra.mxu0 %v376
  %416 = vmatprep.subr.mxu0 0.0
  %417 = vmatpush1.msra.mxu0 %v377
  %418 = vmatprep.subr.mxu0 0.0
  %419 = vmatpush1.msra.mxu0 %v412
  %420 = vmatprep.subr.mxu0 0.0
  %421 = vmatpush1.msra.mxu0 0.0
  %422 = vmatprep.subr.mxu0 0.0
  %423 = vmatpush1.msra.mxu0 0.0
  %424 = vmatprep.subr.mxu0 0.0
  %425 = vmatpush1.msra.mxu0 0.0
  %426 = vmatprep.subr.mxu0 0.0
  %427 = vmatpush1.msra.mxu0 0.0
  %428 = vmatprep.subr.mxu0 0.0
  %429 = vmatpush1.msra.mxu0 0.0
  %430 = vmatprep.subr.mxu0 0.0
  %431 = vmatpush1.msra.mxu0 0.0
  %432 = vmatprep.subr.mxu0 0.0
  %433 = vmatpush1.msra.mxu0 0.0
  %434 = vmatprep.subr.mxu0 0.0
  %435 = vmatpush1.msra.mxu0 0.0
  %436 = vmatprep.subr.mxu0 0.0
  %437 = vmatpush1.msra.mxu0 0.0
  %438 = vmatprep.subr.mxu0 0.0
  %439 = vmatpush1.msra.mxu0 0.0
  %440 = vmatprep.subr.mxu0 0.0
  %441 = vmatpush1.msra.mxu0 0.0
  %442 = vmatprep.subr.mxu0 0.0
  %443 = vmatpush1.msra.mxu0 0.0
  %444 = vmatprep.subr.mxu0 0.0
  %445 = vmatpush1.msra.mxu0 0.0
  %446 = vmatprep.subr.mxu0 0.0
  %447 = vmatpush1.msra.mxu0 0.0
  %448 = vmatprep.subr.mxu0 0.0
  %449 = vmatpush1.msra.mxu0 0.0
  %450 = vmatprep.subr.mxu0 0.0
  %451 = vmatpush1.msra.mxu0 0.0
  %452 = vmatprep.subr.mxu0 0.0
  %453 = vmatpush1.msra.mxu0 0.0
  %454 = vmatprep.subr.mxu0 0.0
  %455 = vmatpush1.msra.mxu0 0.0
  %456 = vmatprep.subr.mxu0 0.0
  %457 = vmatpush1.msra.mxu0 0.0
  %458 = vmatprep.subr.mxu0 0.0
  %459 = vmatpush1.msra.mxu0 0.0
  %460 = vmatprep.subr.mxu0 0.0
  %461 = vmatpush1.msra.mxu0 0.0
  %462 = vmatprep.subr.mxu0 0.0
  %463 = vmatpush1.msra.mxu0 0.0
  %464 = vmatprep.subr.mxu0 0.0
  %465 = vmatpush1.msra.mxu0 0.0
  %466 = vmatprep.subr.mxu0 0.0
  %467 = vmatpush1.msra.mxu0 0.0
  %468 = vmatprep.subr.mxu0 0.0
  %469 = vmatpush1.msra.mxu0 0.0
  %470 = vmatprep.subr.mxu0 0.0
  %471 = vmatpush1.msra.mxu0 0.0
  %472 = vmatprep.subr.mxu0 0.0
  %473 = vmatpush1.msra.mxu0 0.0
  %474 = vmatprep.subr.mxu0 0.0
  %475 = vmatpush1.msra.mxu0 0.0
  %476 = vmatprep.subr.mxu0 0.0
  %477 = vmatpush1.msra.mxu0 0.0
  %478 = vmatprep.mubr.f32.mxu0 0.0
  %479 = vmatmul.mubr.f32.gmra.mrb[0].mxu0 %v403
  %v480 = vpop.f32.mrb[0].mxu0
  %v481 = vadd.f32 %v390, %v480
  %v482 = vpop.f32.mrb[0].mxu0
  %483 = vmatprep.mubr.f32.mxu0 0.0
  %484 = vmatmul.mubr.f32.gmra.mrb[0].mxu0 %v406
  %v485 = vpop.f32.mrb[0].mxu0
  %v486 = vadd.f32 %v395, %v485
  %v487 = vpop.f32.mrb[0].mxu0
  %488 = vmatprep.mubr.f32.mxu0 0.0
  %489 = vmatmul.mubr.f32.gmra.mrb[0].mxu0 %v409
  %v490 = vpop.f32.mrb[0].mxu0
  %v491 = vadd.f32 %v400, %v490
  %v492 = vpop.f32.mrb[0].mxu0
  %493 = vdwg.mxu0
  %v494 = vtanh.pop %v481
  %v495 = vtanh.pop %v486
  %v496 = vtanh.pop %v491
  %v497 = vld [vmem:[%s4] sm:$0x1f]
  %v498 = vld [vmem:[%s5] sm:$0x1f]
  %500 = vset.pattern.permute.xlu0 0
  %501 = vperm.xlu0 %500, %v498
  %v502 = vpop.permute.xlu0 %501
  %v505 = vsel %vm164, %v497, 0
  %v508 = vsel %vm174, %v496, 0
  %510 = vmatprep.subr.mxu0 0.0
  %511 = vmatpush1.msra.mxu0 %v494
  %512 = vmatprep.subr.mxu0 0.0
  %513 = vmatpush1.msra.mxu0 %v495
  %514 = vmatprep.subr.mxu0 0.0
  %515 = vmatpush1.msra.mxu0 %v508
  %516 = vmatprep.subr.mxu0 0.0
  %517 = vmatpush1.msra.mxu0 0.0
  %518 = vmatprep.subr.mxu0 0.0
  %519 = vmatpush1.msra.mxu0 0.0
  %520 = vmatprep.subr.mxu0 0.0
  %521 = vmatpush1.msra.mxu0 0.0
  %522 = vmatprep.subr.mxu0 0.0
  %523 = vmatpush1.msra.mxu0 0.0
  %524 = vmatprep.subr.mxu0 0.0
  %525 = vmatpush1.msra.mxu0 0.0
  %526 = vmatprep.subr.mxu0 0.0
  %527 = vmatpush1.msra.mxu0 0.0
  %528 = vmatprep.subr.mxu0 0.0
  %529 = vmatpush1.msra.mxu0 0.0
  %530 = vmatprep.subr.mxu0 0.0
  %531 = vmatpush1.msra.mxu0 0.0
  %532 = vmatprep.subr.mxu0 0.0
  %533 = vmatpush1.msra.mxu0 0.0
  %534 = vmatprep.subr.mxu0 0.0
  %535 = vmatpush1.msra.mxu0 0.0
  %536 = vmatprep.subr.mxu0 0.0
  %537 = vmatpush1.msra.mxu0 0.0
  %538 = vmatprep.subr.mxu0 0.0
  %539 = vmatpush1.msra.mxu0 0.0
  %540 = vmatprep.subr.mxu0 0.0
  %541 = vmatpush1.msra.mxu0 0.0
  %542 = vmatprep.subr.mxu0 0.0
  %543 = vmatpush1.msra.mxu0 0.0
  %544 = vmatprep.subr.mxu0 0.0
  %545 = vmatpush1.msra.mxu0 0.0
  %546 = vmatprep.subr.mxu0 0.0
  %547 = vmatpush1.msra.mxu0 0.0
  %548 = vmatprep.subr.mxu0 0.0
  %549 = vmatpush1.msra.mxu0 0.0
  %550 = vmatprep.subr.mxu0 0.0
  %551 = vmatpush1.msra.mxu0 0.0
  %552 = vmatprep.subr.mxu0 0.0
  %553 = vmatpush1.msra.mxu0 0.0
  %554 = vmatprep.subr.mxu0 0.0
  %555 = vmatpush1.msra.mxu0 0.0
  %556 = vmatprep.subr.mxu0 0.0
  %557 = vmatpush1.msra.mxu0 0.0
  %558 = vmatprep.subr.mxu0 0.0
  %559 = vmatpush1.msra.mxu0 0.0
  %560 = vmatprep.subr.mxu0 0.0
  %561 = vmatpush1.msra.mxu0 0.0
  %562 = vmatprep.subr.mxu0 0.0
  %563 = vmatpush1.msra.mxu0 0.0
  %564 = vmatprep.subr.mxu0 0.0
  %565 = vmatpush1.msra.mxu0 0.0
  %566 = vmatprep.subr.mxu0 0.0
  %567 = vmatpush1.msra.mxu0 0.0
  %568 = vmatprep.subr.mxu0 0.0
  %569 = vmatpush1.msra.mxu0 0.0
  %570 = vmatprep.subr.mxu0 0.0
  %571 = vmatpush1.msra.mxu0 0.0
  %572 = vmatprep.subr.mxu0 0.0
  %573 = vmatpush1.msra.mxu0 0.0
  %574 = vmatprep.mubr.f32.mxu0 0.0
  %575 = vmatmul.mubr.f32.gmra.mrb[0].mxu0 %v505
  %v576 = vpop.f32.mrb[0].mxu0
  %v577 = vadd.f32 %v502, %v576
  %v578 = vpop.f32.mrb[0].mxu0
  %579 = vdwg.mxu0
  %580 = vst [vmem:[%s6] sm:$0x1f] %v577
  // Predicated region
  $region26: #{ann_part_model_forward.1} parent=0 // pred_check
    _
  $region27: #{ann_part_model_forward.1} parent=0 // pred_check_branch
    %582 = sbr.rel (0) target = $region29
  $region28: #{ann_part_model_forward.1} parent=0 // pred_region
    _
  $region29: #{ann_part_model_forward.1} parent=0 // pred_fallthru
    _
  // Predicated region
  $region30: #{ann_part_model_forward.1} parent=0 // pred_check
    _
  $region31: #{ann_part_model_forward.1} parent=0 // pred_check_branch
    %584 = sbr.rel (0) target = $region33
  $region32: #{ann_part_model_forward.1} parent=0 // pred_region
    _
  $region33: #{ann_part_model_forward.1} parent=0 // pred_fallthru
    _

</llo_original>
